<compile_context>
chip_gen: v5e
topology: v5e:2x2
jax: 0.10.0
libtpu: 0.0.40
codegen_flags: <defaults>
</compile_context>

<pallas_src>
import functools

import jax
import jax.numpy as jnp
from jax.experimental import pallas as pl
from jax.experimental.pallas import tpu as pltpu

# MXU operand dtype.  f32 keeps the demo bit-accurate; on v6e/v7x switch to
# jnp.bfloat16 (weights + im2col/hidden scratch become bf16, accumulation
# stays f32 via preferred_element_type, BN epilogue + residual stay f32).
MATMUL_DTYPE = jnp.float32

LANE = 128  # TPU lane width: channel dims are zero-padded up to a multiple.


def _round_up(n, m):
    return ((n + m - 1) // m) * m


# ----------------------------------------------------------------------------
# Fused Pallas kernel: one batch element per grid step.
# ----------------------------------------------------------------------------
def _resblock_kernel(*refs, K, pad, has_proj, out_act):
    """All refs are 2-D and lane-dense (channels padded to a multiple of 128).

    x_ref   : (L, Cpi)      f32 input (per-batch tile)
    w1_ref  : (K*Cpi, Cpo)  conv1 taps flattened for a single im2col matmul
    s1,t1   : (1, Cpo)      conv1 bias + eval-mode BN1 folded scale/shift (f32)
    w2_ref  : (K*Cpo, Cpo)  conv2 taps
    s2,t2   : (1, Cpo)
    wp,bp   : (Cpi, Cpo) / (1, Cpo)   optional 1x1 projection
    out_ref : (L, Cpo)
    col1    : (L, K*Cpi) scratch  im2col of (implicitly zero-padded) input
    hid     : (L, Cpo)   scratch  hidden activation
    col2    : (L, K*Cpo) scratch  im2col of the hidden activation
    """
    if has_proj:
        (x_ref, w1_ref, s1_ref, t1_ref, w2_ref, s2_ref, t2_ref,
         wp_ref, bp_ref, out_ref, col1_ref, hid_ref, col2_ref) = refs
    else:
        (x_ref, w1_ref, s1_ref, t1_ref, w2_ref, s2_ref, t2_ref,
         out_ref, col1_ref, hid_ref, col2_ref) = refs
        wp_ref = bp_ref = None

    L = x_ref.shape[0]

    def build_im2col(col_ref, src_ref, C):
        # col[l, k*C:(k+1)*C] = src[l + k - pad]  (zero outside [0, L)).
        # Only the pad-halo rows are zeroed; each interior write lands in a
        # lane-aligned column block (k*C is a multiple of 128).  The sublane
        # offset of edge-tap writes is at most `pad` rows (tiny, masked).
        for k in range(K):  # K is tiny -> statically unrolled
            lo = max(0, pad - k)
            hi = min(L, L + pad - k)
            cols = slice(k * C, (k + 1) * C)
            if lo > 0:
                col_ref[0:lo, cols] = jnp.zeros((lo, C), col_ref.dtype)
            if hi < L:
                col_ref[hi:L, cols] = jnp.zeros((L - hi, C), col_ref.dtype)
            col_ref[lo:hi, cols] = src_ref[lo + k - pad:hi + k - pad, :].astype(
                col_ref.dtype)

    # ---- conv1 (stride-1 ConvTranspose1d) + bias+BN1 (eval) + LeakyReLU(0.2)
    build_im2col(col1_ref, x_ref, x_ref.shape[1])
    h = jnp.dot(col1_ref[...], w1_ref[...], preferred_element_type=jnp.float32)
    h = h * s1_ref[...] + t1_ref[...]
    h = jnp.maximum(h, 0.2 * h)                       # LeakyReLU(0.2)
    hid_ref[...] = h.astype(hid_ref.dtype)

    # ---- conv2 + bias+BN2 (eval)
    build_im2col(col2_ref, hid_ref, hid_ref.shape[1])
    y = jnp.dot(col2_ref[...], w2_ref[...], preferred_element_type=jnp.float32)
    y = y * s2_ref[...] + t2_ref[...]

    # ---- residual path (optional 1x1 projection), add, optional activation
    if has_proj:
        y0 = jnp.dot(x_ref[...].astype(MATMUL_DTYPE), wp_ref[...],
                     preferred_element_type=jnp.float32) + bp_ref[...]
    else:
        y0 = x_ref[...].astype(jnp.float32)           # Cin == Cout (padded)
    y = y + y0
    if out_act:
        y = jnp.maximum(y, 0.2 * y)
    out_ref[...] = y.astype(out_ref.dtype)


# ----------------------------------------------------------------------------
# Wrapper
# ----------------------------------------------------------------------------
def res_block_transpose(x_nlc, packed, *, out_act=True):
    """x_nlc: (N, L, Cin) f32 channels-last.  Returns (N, L, Cout) f32."""
    N, L, cin = x_nlc.shape
    cout = packed["cout"]
    cpi, cpo = packed["cp_in"], packed["cp_out"]
    K, pad = packed["K"], packed["pad"]
    w1, s1, t1 = packed["conv1"]
    w2, s2, t2 = packed["conv2"]
    proj = packed["proj"]
    has_proj = proj is not None

    # Lane-dense channel layout: zero-pad Cin up to a multiple of 128.
    x_p = jnp.pad(x_nlc.astype(jnp.float32), ((0, 0), (0, 0), (0, cpi - cin)))

    args = [x_p, w1, s1, t1, w2, s2, t2]
    in_specs = [
        pl.BlockSpec((None, L, cpi), lambda n: (n, 0, 0)),   # per-batch input tile
        pl.BlockSpec((K * cpi, cpo), lambda n: (0, 0)),      # resident weights
        pl.BlockSpec((1, cpo), lambda n: (0, 0)),
        pl.BlockSpec((1, cpo), lambda n: (0, 0)),
        pl.BlockSpec((K * cpo, cpo), lambda n: (0, 0)),
        pl.BlockSpec((1, cpo), lambda n: (0, 0)),
        pl.BlockSpec((1, cpo), lambda n: (0, 0)),
    ]
    if has_proj:
        wp, bp = proj
        args += [wp, bp]
        in_specs += [pl.BlockSpec((cpi, cpo), lambda n: (0, 0)),
                     pl.BlockSpec((1, cpo), lambda n: (0, 0))]

    kernel = functools.partial(_resblock_kernel, K=K, pad=pad,
                               has_proj=has_proj, out_act=out_act)
    out_p = pl.pallas_call(
        kernel,
        out_shape=jax.ShapeDtypeStruct((N, L, cpo), jnp.float32),
        grid=(N,),
        in_specs=in_specs,
        out_specs=pl.BlockSpec((None, L, cpo), lambda n: (n, 0, 0)),
        scratch_shapes=[
            pltpu.VMEM((L, K * cpi), MATMUL_DTYPE),   # im2col of input
            pltpu.VMEM((L, cpo), MATMUL_DTYPE),       # hidden activation
            pltpu.VMEM((L, K * cpo), MATMUL_DTYPE),   # im2col of hidden
        ],
        compiler_params=pltpu.CompilerParams(
            dimension_semantics=("parallel",),        # pipelined; megacore on v7x
            vmem_limit_bytes=32 * 1024 * 1024),
    )(*args)
    return out_p[:, :, :cout]


# ----------------------------------------------------------------------------
# Parameter setup (PyTorch layouts) and packing for the kernel
# ----------------------------------------------------------------------------
def init_raw_params(key, cin, cout, k):
    """Synthetic params in PyTorch layouts (ConvTranspose1d weight: (Cin,Cout,K))."""
    ks = jax.random.split(key, 16)
    raw = {
        "conv1": (0.05 * jax.random.normal(ks[0], (cin, cout, k), jnp.float32),
                  0.05 * jax.random.normal(ks[1], (cout,), jnp.float32)),
        "bn1": (1.0 + 0.1 * jax.random.normal(ks[2], (cout,), jnp.float32),
                0.1 * jax.random.normal(ks[3], (cout,), jnp.float32),
                0.1 * jax.random.normal(ks[4], (cout,), jnp.float32),
                1.0 + 0.1 * jax.random.uniform(ks[5], (cout,), jnp.float32)),
        "conv2": (0.05 * jax.random.normal(ks[6], (cout, cout, k), jnp.float32),
                  0.05 * jax.random.normal(ks[7], (cout,), jnp.float32)),
        "bn2": (1.0 + 0.1 * jax.random.normal(ks[8], (cout,), jnp.float32),
                0.1 * jax.random.normal(ks[9], (cout,), jnp.float32),
                0.1 * jax.random.normal(ks[10], (cout,), jnp.float32),
                1.0 + 0.1 * jax.random.uniform(ks[11], (cout,), jnp.float32)),
    }
    if cin != cout:  # project_features
        raw["proj"] = (0.05 * jax.random.normal(ks[12], (cin, cout, 1), jnp.float32),
                       0.05 * jax.random.normal(ks[13], (cout,), jnp.float32))
    else:
        raw["proj"] = None
    return raw


def pack_params(raw, stride, padding):
    """PyTorch-layout params -> fused-kernel layout (lane-padded, im2col weights)."""
    assert stride == 1, "only stride=1 is supported (residual needs L_out==L_in)"
    w1_t, b1 = raw["conv1"]
    w2_t, b2 = raw["conv2"]
    cin, cout, K = w1_t.shape
    assert K - 1 == 2 * padding, "need L_out == L_in for the residual add"
    pad = K - 1 - padding                      # equivalent forward-conv padding

    cpi = _round_up(cin, LANE)
    cpo = _round_up(cout, LANE)

    def conv_taps(w_t, ci, cpi_):
        # (Ci, Cout, K) ConvTranspose1d weight -> flipped conv taps, lane-padded,
        # flattened to (K*Cpi_, Cpo) to match the im2col column layout.
        taps = jnp.flip(jnp.transpose(w_t, (2, 0, 1)), axis=0)   # (K, Ci, Cout)
        taps = jnp.pad(taps, ((0, 0), (0, cpi_ - ci), (0, cpo - cout)))
        return taps.reshape(K * cpi_, cpo).astype(MATMUL_DTYPE)

    def fold(bias, gamma, beta, mean, var, eps=1e-5):
        # Fold conv bias + eval-mode BatchNorm1d into per-channel scale/shift.
        scale = gamma / jnp.sqrt(var + eps)
        shift = beta + (bias - mean) * scale
        scale = jnp.pad(scale, (0, cpo - cout)).reshape(1, cpo).astype(jnp.float32)
        shift = jnp.pad(shift, (0, cpo - cout)).reshape(1, cpo).astype(jnp.float32)
        return scale, shift

    s1, t1 = fold(b1, *raw["bn1"])
    s2, t2 = fold(b2, *raw["bn2"])
    packed = {
        "conv1": (conv_taps(w1_t, cin, cpi), s1, t1),
        "conv2": (conv_taps(w2_t, cout, cpo), s2, t2),
        "K": K, "pad": pad,
        "cin": cin, "cout": cout, "cp_in": cpi, "cp_out": cpo,
        "proj": None,
    }
    if raw["proj"] is not None:
        wp_t, bp = raw["proj"]                 # (Cin, Cout, 1)
        wp = jnp.pad(wp_t[:, :, 0], ((0, cpi - cin), (0, cpo - cout)))
        bp = jnp.pad(bp, (0, cpo - cout)).reshape(1, cpo).astype(jnp.float32)
        packed["proj"] = (wp.astype(MATMUL_DTYPE), bp)
    else:
        assert cin == cout
    return packed


# ----------------------------------------------------------------------------
# Pure-JAX reference (scatter-form ConvTranspose1d, PyTorch NCL layout)
# ----------------------------------------------------------------------------
def _convtranspose1d_ref(x_ncl, w_t, b, stride, padding):
    N, Cin, L = x_ncl.shape
    _, Cout, K = w_t.shape
    full = jnp.zeros((N, Cout, (L - 1) * stride + K), jnp.float32)
    for l in range(L):
        contrib = jnp.einsum("ni,iok->nok", x_ncl[:, :, l], w_t,
                             precision=jax.lax.Precision.HIGHEST)
        full = full.at[:, :, l * stride:l * stride + K].add(contrib)
    l_out = (L - 1) * stride - 2 * padding + K
    return full[:, :, padding:padding + l_out] + b[None, :, None]


def _bn_eval_ref(x_ncl, gamma, beta, mean, var, eps=1e-5):
    scale = gamma / jnp.sqrt(var + eps)
    return (x_ncl - mean[None, :, None]) * scale[None, :, None] + beta[None, :, None]


def _lrelu(x):
    return jnp.where(x >= 0, x, 0.2 * x)


def res_block_transpose_ref(x_ncl, raw, stride, padding, out_act=True):
    y0 = x_ncl
    y = _convtranspose1d_ref(x_ncl, *raw["conv1"], stride, padding)
    y = _lrelu(_bn_eval_ref(y, *raw["bn1"]))
    y = _convtranspose1d_ref(y, *raw["conv2"], stride, padding)
    y = _bn_eval_ref(y, *raw["bn2"])
    if raw["proj"] is not None:
        y0 = _convtranspose1d_ref(x_ncl, *raw["proj"], 1, 0)
    y = y + y0
    if out_act:
        y = _lrelu(y)
    return y


# ----------------------------------------------------------------------------
if __name__ == "__main__":
    key = jax.random.PRNGKey(0)
    k1, k2, kx1, kx2 = jax.random.split(key, 4)

    # Config 1: in_channels != out_channels (projection path), out_act=True.
    N, L, Cin, Cout, K, stride, padding = 2, 16, 4, 8, 3, 1, 1
    raw = init_raw_params(k1, Cin, Cout, K)
    packed = pack_params(raw, stride, padding)
    x_ncl = jax.random.normal(kx1, (N, Cin, L), jnp.float32)     # PyTorch NCL
    out = res_block_transpose(jnp.transpose(x_ncl, (0, 2, 1)), packed, out_act=True)
    out = jax.block_until_ready(out)
    assert out.shape == (N, L, Cout), out.shape
    ref = jnp.transpose(res_block_transpose_ref(x_ncl, raw, stride, padding, True),
                        (0, 2, 1))
    err = float(jnp.max(jnp.abs(out - ref)))
    assert err < 1e-3, f"config1 max abs err {err}"

    # Config 2: in_channels == out_channels (identity skip), out_act=False.
    Cin2 = Cout2 = 8
    raw2 = init_raw_params(k2, Cin2, Cout2, K)
    packed2 = pack_params(raw2, stride, padding)
    x2_ncl = jax.random.normal(kx2, (N, Cin2, L), jnp.float32)
    out2 = res_block_transpose(jnp.transpose(x2_ncl, (0, 2, 1)), packed2, out_act=False)
    out2 = jax.block_until_ready(out2)
    assert out2.shape == (N, L, Cout2), out2.shape
    ref2 = jnp.transpose(res_block_transpose_ref(x2_ncl, raw2, stride, padding, False),
                         (0, 2, 1))
    err2 = float(jnp.max(jnp.abs(out2 - ref2)))
    assert err2 < 1e-3, f"config2 max abs err {err2}"

    print("KERNEL_OK")
</pallas_src>

<mosaic_0001>
module attributes {stable_mosaic.version = 11 : i64} {
  func.func @_resblock_kernel(%arg0: i32, %arg1: memref<1x16x128xf32, #tpu.memory_space<vmem>>, %arg2: memref<384x128xf32, #tpu.memory_space<vmem>>, %arg3: memref<1x128xf32, #tpu.memory_space<vmem>>, %arg4: memref<1x128xf32, #tpu.memory_space<vmem>>, %arg5: memref<384x128xf32, #tpu.memory_space<vmem>>, %arg6: memref<1x128xf32, #tpu.memory_space<vmem>>, %arg7: memref<1x128xf32, #tpu.memory_space<vmem>>, %arg8: memref<128x128xf32, #tpu.memory_space<vmem>>, %arg9: memref<1x128xf32, #tpu.memory_space<vmem>>, %arg10: memref<1x16x128xf32, #tpu.memory_space<vmem>>, %arg11: memref<16x384xf32, #tpu.memory_space<vmem>>, %arg12: memref<16x128xf32, #tpu.memory_space<vmem>>, %arg13: memref<16x384xf32, #tpu.memory_space<vmem>>) attributes {dimension_semantics = [#tpu.dimension_semantics<parallel>], iteration_bounds = array<i64: 2>, scalar_prefetch = 0 : i64, scratch_operands = 3 : i64, tpu.core_type = #tpu.core_type<tc>, window_params = [{transform_indices = @transform_0, window_bounds = array<i64: 1, 16, 128>}, {pipeline_mode = #tpu.pipeline_mode<synchronous>, transform_indices = @transform_1, window_bounds = array<i64: 384, 128>}, {pipeline_mode = #tpu.pipeline_mode<synchronous>, transform_indices = @transform_2, window_bounds = array<i64: 1, 128>}, {pipeline_mode = #tpu.pipeline_mode<synchronous>, transform_indices = @transform_3, window_bounds = array<i64: 1, 128>}, {pipeline_mode = #tpu.pipeline_mode<synchronous>, transform_indices = @transform_4, window_bounds = array<i64: 384, 128>}, {pipeline_mode = #tpu.pipeline_mode<synchronous>, transform_indices = @transform_5, window_bounds = array<i64: 1, 128>}, {pipeline_mode = #tpu.pipeline_mode<synchronous>, transform_indices = @transform_6, window_bounds = array<i64: 1, 128>}, {pipeline_mode = #tpu.pipeline_mode<synchronous>, transform_indices = @transform_7, window_bounds = array<i64: 128, 128>}, {pipeline_mode = #tpu.pipeline_mode<synchronous>, transform_indices = @transform_8, window_bounds = array<i64: 1, 128>}, {transform_indices = @transform_9, window_bounds = array<i64: 1, 16, 128>}]} {
    %cst = arith.constant 0.000000e+00 : f32
    %0 = vector.broadcast %cst : f32 to vector<1x128xf32>
    %c0 = arith.constant 0 : index
    %c0_0 = arith.constant 0 : index
    %1 = vector.load %arg11[%c0, %c0_0] : memref<16x384xf32, #tpu.memory_space<vmem>>, vector<1x128xf32>
    tpu.vector_store %arg11[%c0, %c0_0], %0 {strides = array<i32>} : memref<16x384xf32, #tpu.memory_space<vmem>>, vector<1x128xf32>,
    %c0_1 = arith.constant 0 : index
    %c0_2 = arith.constant 0 : index
    %c0_3 = arith.constant 0 : index
    %2 = vector.load %arg1[%c0_1, %c0_2, %c0_3] : memref<1x16x128xf32, #tpu.memory_space<vmem>>, vector<1x15x128xf32>
    %3 = vector.shape_cast %2 : vector<1x15x128xf32> to vector<15x128xf32>
    %c1 = arith.constant 1 : index
    %c0_4 = arith.constant 0 : index
    %4 = vector.load %arg11[%c1, %c0_4] : memref<16x384xf32, #tpu.memory_space<vmem>>, vector<15x128xf32>
    tpu.vector_store %arg11[%c1, %c0_4], %3 {strides = array<i32>} : memref<16x384xf32, #tpu.memory_space<vmem>>, vector<15x128xf32>,
    %c0_5 = arith.constant 0 : index
    %c0_6 = arith.constant 0 : index
    %c0_7 = arith.constant 0 : index
    %5 = vector.load %arg1[%c0_5, %c0_6, %c0_7] : memref<1x16x128xf32, #tpu.memory_space<vmem>>, vector<1x16x128xf32>
    %6 = vector.shape_cast %5 : vector<1x16x128xf32> to vector<16x128xf32>
    %c0_8 = arith.constant 0 : index
    %c128 = arith.constant 128 : index
    %7 = vector.load %arg11[%c0_8, %c128] : memref<16x384xf32, #tpu.memory_space<vmem>>, vector<16x128xf32>
    tpu.vector_store %arg11[%c0_8, %c128], %6 {strides = array<i32>} : memref<16x384xf32, #tpu.memory_space<vmem>>, vector<16x128xf32>,
    %cst_9 = arith.constant 0.000000e+00 : f32
    %8 = vector.broadcast %cst_9 : f32 to vector<1x128xf32>
    %c15 = arith.constant 15 : index
    %c256 = arith.constant 256 : index
    %9 = vector.load %arg11[%c15, %c256] : memref<16x384xf32, #tpu.memory_space<vmem>>, vector<1x128xf32>
    tpu.vector_store %arg11[%c15, %c256], %8 {strides = array<i32>} : memref<16x384xf32, #tpu.memory_space<vmem>>, vector<1x128xf32>,
    %c0_10 = arith.constant 0 : index
    %c1_11 = arith.constant 1 : index
    %c0_12 = arith.constant 0 : index
    %10 = vector.load %arg1[%c0_10, %c1_11, %c0_12] : memref<1x16x128xf32, #tpu.memory_space<vmem>>, vector<1x15x128xf32>
    %11 = vector.shape_cast %10 : vector<1x15x128xf32> to vector<15x128xf32>
    %c0_13 = arith.constant 0 : index
    %c256_14 = arith.constant 256 : index
    %12 = vector.load %arg11[%c0_13, %c256_14] : memref<16x384xf32, #tpu.memory_space<vmem>>, vector<15x128xf32>
    tpu.vector_store %arg11[%c0_13, %c256_14], %11 {strides = array<i32>} : memref<16x384xf32, #tpu.memory_space<vmem>>, vector<15x128xf32>,
    %c0_15 = arith.constant 0 : index
    %c0_16 = arith.constant 0 : index
    %13 = vector.load %arg11[%c0_15, %c0_16] : memref<16x384xf32, #tpu.memory_space<vmem>>, vector<16x384xf32>
    %c0_17 = arith.constant 0 : index
    %c0_18 = arith.constant 0 : index
    %14 = vector.load %arg2[%c0_17, %c0_18] : memref<384x128xf32, #tpu.memory_space<vmem>>, vector<384x128xf32>
    %cst_19 = arith.constant dense<0.000000e+00> : vector<16x128xf32>
    %15 = tpu.matmul %13, %14, %cst_19 {dimension_numbers = #tpu.dot_dimension_numbers<[1], [0], [0], [1], [0, 0, 1, 1], [], []>} : vector<16x384xf32>, vector<384x128xf32>, vector<16x128xf32> -> vector<16x128xf32>
    %c0_20 = arith.constant 0 : index
    %c0_21 = arith.constant 0 : index
    %16 = vector.load %arg3[%c0_20, %c0_21] : memref<1x128xf32, #tpu.memory_space<vmem>>, vector<1x128xf32>
    %17 = vector.broadcast %16 : vector<1x128xf32> to vector<16x128xf32>
    %18 = arith.mulf %15, %17 : vector<16x128xf32>
    %c0_22 = arith.constant 0 : index
    %c0_23 = arith.constant 0 : index
    %19 = vector.load %arg4[%c0_22, %c0_23] : memref<1x128xf32, #tpu.memory_space<vmem>>, vector<1x128xf32>
    %20 = vector.broadcast %19 : vector<1x128xf32> to vector<16x128xf32>
    %21 = arith.addf %18, %20 : vector<16x128xf32>
    %cst_24 = arith.constant 2.000000e-01 : f32
    %22 = vector.broadcast %cst_24 : f32 to vector<16x128xf32>
    %23 = arith.mulf %22, %21 : vector<16x128xf32>
    %24 = arith.maximumf %21, %23 : vector<16x128xf32>
    %c0_25 = arith.constant 0 : index
    %c0_26 = arith.constant 0 : index
    %25 = vector.load %arg12[%c0_25, %c0_26] : memref<16x128xf32, #tpu.memory_space<vmem>>, vector<16x128xf32>
    tpu.vector_store %arg12[%c0_25, %c0_26], %24 {strides = array<i32>} : memref<16x128xf32, #tpu.memory_space<vmem>>, vector<16x128xf32>,
    %cst_27 = arith.constant 0.000000e+00 : f32
    %26 = vector.broadcast %cst_27 : f32 to vector<1x128xf32>
    %c0_28 = arith.constant 0 : index
    %c0_29 = arith.constant 0 : index
    %27 = vector.load %arg13[%c0_28, %c0_29] : memref<16x384xf32, #tpu.memory_space<vmem>>, vector<1x128xf32>
    tpu.vector_store %arg13[%c0_28, %c0_29], %26 {strides = array<i32>} : memref<16x384xf32, #tpu.memory_space<vmem>>, vector<1x128xf32>,
    %c0_30 = arith.constant 0 : index
    %c0_31 = arith.constant 0 : index
    %28 = vector.load %arg12[%c0_30, %c0_31] : memref<16x128xf32, #tpu.memory_space<vmem>>, vector<15x128xf32>
    %c1_32 = arith.constant 1 : index
    %c0_33 = arith.constant 0 : index
    %29 = vector.load %arg13[%c1_32, %c0_33] : memref<16x384xf32, #tpu.memory_space<vmem>>, vector<15x128xf32>
    tpu.vector_store %arg13[%c1_32, %c0_33], %28 {strides = array<i32>} : memref<16x384xf32, #tpu.memory_space<vmem>>, vector<15x128xf32>,
    %c0_34 = arith.constant 0 : index
    %c0_35 = arith.constant 0 : index
    %30 = vector.load %arg12[%c0_34, %c0_35] : memref<16x128xf32, #tpu.memory_space<vmem>>, vector<16x128xf32>
    %c0_36 = arith.constant 0 : index
    %c128_37 = arith.constant 128 : index
    %31 = vector.load %arg13[%c0_36, %c128_37] : memref<16x384xf32, #tpu.memory_space<vmem>>, vector<16x128xf32>
    tpu.vector_store %arg13[%c0_36, %c128_37], %30 {strides = array<i32>} : memref<16x384xf32, #tpu.memory_space<vmem>>, vector<16x128xf32>,
    %cst_38 = arith.constant 0.000000e+00 : f32
    %32 = vector.broadcast %cst_38 : f32 to vector<1x128xf32>
    %c15_39 = arith.constant 15 : index
    %c256_40 = arith.constant 256 : index
    %33 = vector.load %arg13[%c15_39, %c256_40] : memref<16x384xf32, #tpu.memory_space<vmem>>, vector<1x128xf32>
    tpu.vector_store %arg13[%c15_39, %c256_40], %32 {strides = array<i32>} : memref<16x384xf32, #tpu.memory_space<vmem>>, vector<1x128xf32>,
    %c1_41 = arith.constant 1 : index
    %c0_42 = arith.constant 0 : index
    %34 = vector.load %arg12[%c1_41, %c0_42] : memref<16x128xf32, #tpu.memory_space<vmem>>, vector<15x128xf32>
    %c0_43 = arith.constant 0 : index
    %c256_44 = arith.constant 256 : index
    %35 = vector.load %arg13[%c0_43, %c256_44] : memref<16x384xf32, #tpu.memory_space<vmem>>, vector<15x128xf32>
    tpu.vector_store %arg13[%c0_43, %c256_44], %34 {strides = array<i32>} : memref<16x384xf32, #tpu.memory_space<vmem>>, vector<15x128xf32>,
    %c0_45 = arith.constant 0 : index
    %c0_46 = arith.constant 0 : index
    %36 = vector.load %arg13[%c0_45, %c0_46] : memref<16x384xf32, #tpu.memory_space<vmem>>, vector<16x384xf32>
    %c0_47 = arith.constant 0 : index
    %c0_48 = arith.constant 0 : index
    %37 = vector.load %arg5[%c0_47, %c0_48] : memref<384x128xf32, #tpu.memory_space<vmem>>, vector<384x128xf32>
    %cst_49 = arith.constant dense<0.000000e+00> : vector<16x128xf32>
    %38 = tpu.matmul %36, %37, %cst_49 {dimension_numbers = #tpu.dot_dimension_numbers<[1], [0], [0], [1], [0, 0, 1, 1], [], []>} : vector<16x384xf32>, vector<384x128xf32>, vector<16x128xf32> -> vector<16x128xf32>
    %c0_50 = arith.constant 0 : index
    %c0_51 = arith.constant 0 : index
    %39 = vector.load %arg6[%c0_50, %c0_51] : memref<1x128xf32, #tpu.memory_space<vmem>>, vector<1x128xf32>
    %40 = vector.broadcast %39 : vector<1x128xf32> to vector<16x128xf32>
    %41 = arith.mulf %38, %40 : vector<16x128xf32>
    %c0_52 = arith.constant 0 : index
    %c0_53 = arith.constant 0 : index
    %42 = vector.load %arg7[%c0_52, %c0_53] : memref<1x128xf32, #tpu.memory_space<vmem>>, vector<1x128xf32>
    %43 = vector.broadcast %42 : vector<1x128xf32> to vector<16x128xf32>
    %44 = arith.addf %41, %43 : vector<16x128xf32>
    %c0_54 = arith.constant 0 : index
    %c0_55 = arith.constant 0 : index
    %c0_56 = arith.constant 0 : index
    %45 = vector.load %arg1[%c0_54, %c0_55, %c0_56] : memref<1x16x128xf32, #tpu.memory_space<vmem>>, vector<1x16x128xf32>
    %46 = vector.shape_cast %45 : vector<1x16x128xf32> to vector<16x128xf32>
    %c0_57 = arith.constant 0 : index
    %c0_58 = arith.constant 0 : index
    %47 = vector.load %arg8[%c0_57, %c0_58] : memref<128x128xf32, #tpu.memory_space<vmem>>, vector<128x128xf32>
    %cst_59 = arith.constant dense<0.000000e+00> : vector<16x128xf32>
    %48 = tpu.matmul %46, %47, %cst_59 {dimension_numbers = #tpu.dot_dimension_numbers<[1], [0], [0], [1], [0, 0, 1, 1], [], []>} : vector<16x128xf32>, vector<128x128xf32>, vector<16x128xf32> -> vector<16x128xf32>
    %c0_60 = arith.constant 0 : index
    %c0_61 = arith.constant 0 : index
    %49 = vector.load %arg9[%c0_60, %c0_61] : memref<1x128xf32, #tpu.memory_space<vmem>>, vector<1x128xf32>
    %50 = vector.broadcast %49 : vector<1x128xf32> to vector<16x128xf32>
    %51 = arith.addf %48, %50 : vector<16x128xf32>
    %52 = arith.addf %44, %51 : vector<16x128xf32>
    %cst_62 = arith.constant 2.000000e-01 : f32
    %53 = vector.broadcast %cst_62 : f32 to vector<16x128xf32>
    %54 = arith.mulf %53, %52 : vector<16x128xf32>
    %55 = arith.maximumf %52, %54 : vector<16x128xf32>
    %c0_63 = arith.constant 0 : index
    %c0_64 = arith.constant 0 : index
    %c0_65 = arith.constant 0 : index
    %56 = vector.load %arg10[%c0_63, %c0_64, %c0_65] : memref<1x16x128xf32, #tpu.memory_space<vmem>>, vector<1x16x128xf32>
    %57 = vector.shape_cast %56 : vector<1x16x128xf32> to vector<16x128xf32>
    %58 = vector.shape_cast %55 : vector<16x128xf32> to vector<1x16x128xf32>
    tpu.vector_store %arg10[%c0_63, %c0_64, %c0_65], %58 {strides = array<i32>} : memref<1x16x128xf32, #tpu.memory_space<vmem>>, vector<1x16x128xf32>,
    return
  }
  func.func @transform_0(%arg0: i32) -> (i32, i32, i32) {
    %c0_i32 = arith.constant 0 : i32
    %c0_i32_0 = arith.constant 0 : i32
    %c0_i32_1 = arith.constant 0 : i32
    return %arg0, %c0_i32, %c0_i32_0 : i32, i32, i32
  }
  func.func @transform_1(%arg0: i32) -> (i32, i32) {
    %c0_i32 = arith.constant 0 : i32
    %c0_i32_0 = arith.constant 0 : i32
    %c0_i32_1 = arith.constant 0 : i32
    return %c0_i32, %c0_i32_0 : i32, i32
  }
  func.func @transform_2(%arg0: i32) -> (i32, i32) {
    %c0_i32 = arith.constant 0 : i32
    %c0_i32_0 = arith.constant 0 : i32
    %c0_i32_1 = arith.constant 0 : i32
    return %c0_i32, %c0_i32_0 : i32, i32
  }
  func.func @transform_3(%arg0: i32) -> (i32, i32) {
    %c0_i32 = arith.constant 0 : i32
    %c0_i32_0 = arith.constant 0 : i32
    %c0_i32_1 = arith.constant 0 : i32
    return %c0_i32, %c0_i32_0 : i32, i32
  }
  func.func @transform_4(%arg0: i32) -> (i32, i32) {
    %c0_i32 = arith.constant 0 : i32
    %c0_i32_0 = arith.constant 0 : i32
    %c0_i32_1 = arith.constant 0 : i32
    return %c0_i32, %c0_i32_0 : i32, i32
  }
  func.func @transform_5(%arg0: i32) -> (i32, i32) {
    %c0_i32 = arith.constant 0 : i32
    %c0_i32_0 = arith.constant 0 : i32
    %c0_i32_1 = arith.constant 0 : i32
    return %c0_i32, %c0_i32_0 : i32, i32
  }
  func.func @transform_6(%arg0: i32) -> (i32, i32) {
    %c0_i32 = arith.constant 0 : i32
    %c0_i32_0 = arith.constant 0 : i32
    %c0_i32_1 = arith.constant 0 : i32
    return %c0_i32, %c0_i32_0 : i32, i32
  }
  func.func @transform_7(%arg0: i32) -> (i32, i32) {
    %c0_i32 = arith.constant 0 : i32
    %c0_i32_0 = arith.constant 0 : i32
    %c0_i32_1 = arith.constant 0 : i32
    return %c0_i32, %c0_i32_0 : i32, i32
  }
  func.func @transform_8(%arg0: i32) -> (i32, i32) {
    %c0_i32 = arith.constant 0 : i32
    %c0_i32_0 = arith.constant 0 : i32
    %c0_i32_1 = arith.constant 0 : i32
    return %c0_i32, %c0_i32_0 : i32, i32
  }
  func.func @transform_9(%arg0: i32) -> (i32, i32, i32) {
    %c0_i32 = arith.constant 0 : i32
    %c0_i32_0 = arith.constant 0 : i32
    %c0_i32_1 = arith.constant 0 : i32
    return %arg0, %c0_i32, %c0_i32_0 : i32, i32, i32
  }
}

</mosaic_0001>

<llo_original>
// kernel: tpu_custom_call.1
$region0: #{tpu_custom_call.1}
  #allocation0 [shape = 'u32[]', space=smem, size = 0x4, offset = 0x4, fixed_abs, tag = 'smem constant byte address 0x4 - core index']
  #allocation1 [shape = 'u32[72,128]{1,0:T(1,128)}', space=vmem, size = 0x9000, scoped, tag = 'internal scratch']
  #allocation2 [shape = 'f32[16,384]{1,0:T(8,128)}', space=vmem, size = 0x6000, scoped, tag = 'scratch operand']
  #allocation3 [shape = 'f32[16,128]{1,0:T(8,128)}', space=vmem, size = 0x2000, scoped, tag = 'scratch operand']
  #allocation4 [shape = 'f32[16,384]{1,0:T(8,128)}', space=vmem, size = 0x6000, scoped, tag = 'scratch operand']
  %s0 = inlined_call_operand.hbm [shape: f32[2,16,128], index: 0, kind: input, shape index: {}]
  %s1 = inlined_call_operand.hbm [shape: f32[384,128], index: 1, kind: input, shape index: {}]
  %s2 = inlined_call_operand.vmem [shape: f32[1,128], index: 2, kind: input, shape index: {}]
  %s3 = inlined_call_operand.vmem [shape: f32[1,128], index: 3, kind: input, shape index: {}]
  %s4 = inlined_call_operand.hbm [shape: f32[384,128], index: 4, kind: input, shape index: {}]
  %s5 = inlined_call_operand.vmem [shape: f32[1,128], index: 5, kind: input, shape index: {}]
  %s6 = inlined_call_operand.vmem [shape: f32[1,128], index: 6, kind: input, shape index: {}]
  %s7 = inlined_call_operand.hbm [shape: f32[128,128], index: 7, kind: input, shape index: {}]
  %s8 = inlined_call_operand.vmem [shape: f32[1,128], index: 8, kind: input, shape index: {}]
  %s9 = inlined_call_operand.hbm [shape: f32[2,16,128], index: 9, kind: output, shape index: {}]
  %s10 = sld [smem:[#allocation0]]
  $region85: #{tpu_custom_call.1} parent=0
    _
  %s12 = ssub.s32 1, %s10
  %s13 = scalar_select 0, %s12, %s10
  $region1: #{tpu_custom_call.1} parent=0
    #allocation5 [shape = 'u8[16384]{0}', space=vmem, size = 0x4000, scoped, tag = 'input window, operand 0']
    #allocation6 [shape = 's32[2]{0}', space=sflag, size = 0x8, scoped, tag = 'scoped memory for tpu_custom_call.1']
    #allocation7 [shape = 's32[2]{0}', space=sflag, size = 0x8, scoped, tag = 'scoped memory for tpu_custom_call.1']
    #allocation8 [shape = 'u8[196608]{0}', space=vmem, size = 0x30000, scoped, tag = 'input window, operand 1, single buffered']
    #allocation9 [shape = 's32[1]{0}', space=sflag, size = 0x4, scoped, tag = 'scoped memory for tpu_custom_call.1']
    #allocation10 [shape = 'u8[196608]{0}', space=vmem, size = 0x30000, scoped, tag = 'input window, operand 4, single buffered']
    #allocation11 [shape = 'u8[65536]{0}', space=vmem, size = 0x10000, scoped, tag = 'input window, operand 7, single buffered']
    #allocation12 [shape = 's32[1]{0}', space=sflag, size = 0x4, scoped, tag = 'scoped memory for tpu_custom_call.1']
    #allocation13 [shape = 'u8[16384]{0}', space=vmem, size = 0x4000, scoped, tag = 'output window, operand 0']
    %14 = vsyncpa [#allocation6], 0
    %s15 = scalar_lea.sflag [#allocation6], 1
    %16 = vsyncpa %s15, 0
    %17 = vsyncpa [#allocation9], 0
    %18 = vsyncpa [#allocation12], 0
    %19 = vsyncpa [#allocation7], 0
    %s20 = scalar_lea.sflag [#allocation7], 1
    %21 = vsyncpa %s20, 0
    loop: start=0, step=1, limit=4
    $region2: #{tpu_custom_call.1} parent=1 // loop_pre_header
      _
    $region3: #{tpu_custom_call.1} parent=1 // loop_header
      %s23 = sphi 0, %s27
      %p24 = scmp.ge.s32.totalorder %s23, 4
      %s33 = sphi 0, %s35
      %s36 = sphi 0, %s33
      %s37 = sphi 0, %s36
      %s53 = sphi 0, %s37
      %s57 = sphi 0, %s57
      %s59 = sphi 0, %s57
      %s60 = sphi 0, %s59
      %s74 = sphi 0, %s60
      %s78 = sphi 0, %s78
      %s80 = sphi 0, %s78
      %s81 = sphi 0, %s80
      %s95 = sphi 0, %s81
      %s99 = sphi 0, %s99
      %s101 = sphi 0, %s99
      %s102 = sphi 0, %s101
      %s116 = sphi 0, %s102
      %s120 = sphi 0, %s120
      %s122 = sphi 0, %s120
      %s123 = sphi 0, %s122
      %s137 = sphi 0, %s123
      %s141 = sphi 0, %s141
      %s143 = sphi 0, %s141
      %s144 = sphi 0, %s143
      %s158 = sphi 0, %s144
      %s162 = sphi 0, %s162
      %s164 = sphi 0, %s162
      %s165 = sphi 0, %s164
      %s179 = sphi 0, %s165
      %s183 = sphi 0, %s183
      %s185 = sphi 0, %s183
      %s186 = sphi 0, %s185
      %s200 = sphi 0, %s186
      %s204 = sphi 0, %s204
      %s206 = sphi 0, %s204
      %s207 = sphi 0, %s206
      %s221 = sphi 0, %s207
      %s227 = sphi 0, %s229
      %s230 = sphi 0, %s227
      %s231 = sphi 0, %s230
      %s247 = sphi 0, %s231
    $region4: #{tpu_custom_call.1} parent=1 // loop_header_branch
      %26 = sbr.rel (%p24) target = $region8
    $region5: #{tpu_custom_call.1} parent=1 // loop_body
      %s28 = ssub.s32 %s23, 1
      %s29 = ssub.s32 %s23, 2
      %s30 = sadd.s32 %s23, 1
      %s31 = ssub.s32 %s23, %s30
      %p32 = scmp.eq.s32.totalorder %s31, 0
      %s34 = sadd.s32 %s33, 1
      %s35 = scalar_select %p32, %s33, %s34
      %p38 = pneg %p32
      %p39 = scmp.eq.s32.totalorder %s23, 1
      %p40 = por %p38, %p39
      %p41 = scmp.ne.s32.totalorder %s33, %s36
      %p42 = scmp.eq.s32.totalorder %s23, 0
      %p43 = por %p41, %p42
      %p44 = scmp.ne.s32.totalorder %s33, %s36
      %p45 = scmp.eq.s32.totalorder %s28, 1
      %p46 = por %p44, %p45
      %p47 = scmp.ne.s32.totalorder %s36, %s37
      %p48 = scmp.eq.s32.totalorder %s28, 0
      %p49 = por %p47, %p48
      %p50 = scmp.ne.s32.totalorder %s36, %s37
      %p51 = scmp.eq.s32.totalorder %s29, 1
      %p52 = por %p50, %p51
      %p54 = scmp.ne.s32.totalorder %s37, %s53
      %p55 = scmp.eq.s32.totalorder %s29, 0
      %p56 = por %p54, %p55
      %s58 = sadd.s32 %s57, 1
      %p61 = scmp.eq.s32.totalorder %s23, 1
      %p62 = scmp.ne.s32.totalorder %s57, %s59
      %p63 = scmp.eq.s32.totalorder %s23, 0
      %p64 = por %p62, %p63
      %p65 = scmp.ne.s32.totalorder %s57, %s59
      %p66 = scmp.eq.s32.totalorder %s28, 1
      %p67 = por %p65, %p66
      %p68 = scmp.ne.s32.totalorder %s59, %s60
      %p69 = scmp.eq.s32.totalorder %s28, 0
      %p70 = por %p68, %p69
      %p71 = scmp.ne.s32.totalorder %s59, %s60
      %p72 = scmp.eq.s32.totalorder %s29, 1
      %p73 = por %p71, %p72
      %p75 = scmp.ne.s32.totalorder %s60, %s74
      %p76 = scmp.eq.s32.totalorder %s29, 0
      %p77 = por %p75, %p76
      %s79 = sadd.s32 %s78, 1
      %p82 = scmp.eq.s32.totalorder %s23, 1
      %p83 = scmp.ne.s32.totalorder %s78, %s80
      %p84 = scmp.eq.s32.totalorder %s23, 0
      %p85 = por %p83, %p84
      %p86 = scmp.ne.s32.totalorder %s78, %s80
      %p87 = scmp.eq.s32.totalorder %s28, 1
      %p88 = por %p86, %p87
      %p89 = scmp.ne.s32.totalorder %s80, %s81
      %p90 = scmp.eq.s32.totalorder %s28, 0
      %p91 = por %p89, %p90
      %p92 = scmp.ne.s32.totalorder %s80, %s81
      %p93 = scmp.eq.s32.totalorder %s29, 1
      %p94 = por %p92, %p93
      %p96 = scmp.ne.s32.totalorder %s81, %s95
      %p97 = scmp.eq.s32.totalorder %s29, 0
      %p98 = por %p96, %p97
      %s100 = sadd.s32 %s99, 1
      %p103 = scmp.eq.s32.totalorder %s23, 1
      %p104 = scmp.ne.s32.totalorder %s99, %s101
      %p105 = scmp.eq.s32.totalorder %s23, 0
      %p106 = por %p104, %p105
      %p107 = scmp.ne.s32.totalorder %s99, %s101
      %p108 = scmp.eq.s32.totalorder %s28, 1
      %p109 = por %p107, %p108
      %p110 = scmp.ne.s32.totalorder %s101, %s102
      %p111 = scmp.eq.s32.totalorder %s28, 0
      %p112 = por %p110, %p111
      %p113 = scmp.ne.s32.totalorder %s101, %s102
      %p114 = scmp.eq.s32.totalorder %s29, 1
      %p115 = por %p113, %p114
      %p117 = scmp.ne.s32.totalorder %s102, %s116
      %p118 = scmp.eq.s32.totalorder %s29, 0
      %p119 = por %p117, %p118
      %s121 = sadd.s32 %s120, 1
      %p124 = scmp.eq.s32.totalorder %s23, 1
      %p125 = scmp.ne.s32.totalorder %s120, %s122
      %p126 = scmp.eq.s32.totalorder %s23, 0
      %p127 = por %p125, %p126
      %p128 = scmp.ne.s32.totalorder %s120, %s122
      %p129 = scmp.eq.s32.totalorder %s28, 1
      %p130 = por %p128, %p129
      %p131 = scmp.ne.s32.totalorder %s122, %s123
      %p132 = scmp.eq.s32.totalorder %s28, 0
      %p133 = por %p131, %p132
      %p134 = scmp.ne.s32.totalorder %s122, %s123
      %p135 = scmp.eq.s32.totalorder %s29, 1
      %p136 = por %p134, %p135
      %p138 = scmp.ne.s32.totalorder %s123, %s137
      %p139 = scmp.eq.s32.totalorder %s29, 0
      %p140 = por %p138, %p139
      %s142 = sadd.s32 %s141, 1
      %p145 = scmp.eq.s32.totalorder %s23, 1
      %p146 = scmp.ne.s32.totalorder %s141, %s143
      %p147 = scmp.eq.s32.totalorder %s23, 0
      %p148 = por %p146, %p147
      %p149 = scmp.ne.s32.totalorder %s141, %s143
      %p150 = scmp.eq.s32.totalorder %s28, 1
      %p151 = por %p149, %p150
      %p152 = scmp.ne.s32.totalorder %s143, %s144
      %p153 = scmp.eq.s32.totalorder %s28, 0
      %p154 = por %p152, %p153
      %p155 = scmp.ne.s32.totalorder %s143, %s144
      %p156 = scmp.eq.s32.totalorder %s29, 1
      %p157 = por %p155, %p156
      %p159 = scmp.ne.s32.totalorder %s144, %s158
      %p160 = scmp.eq.s32.totalorder %s29, 0
      %p161 = por %p159, %p160
      %s163 = sadd.s32 %s162, 1
      %p166 = scmp.eq.s32.totalorder %s23, 1
      %p167 = scmp.ne.s32.totalorder %s162, %s164
      %p168 = scmp.eq.s32.totalorder %s23, 0
      %p169 = por %p167, %p168
      %p170 = scmp.ne.s32.totalorder %s162, %s164
      %p171 = scmp.eq.s32.totalorder %s28, 1
      %p172 = por %p170, %p171
      %p173 = scmp.ne.s32.totalorder %s164, %s165
      %p174 = scmp.eq.s32.totalorder %s28, 0
      %p175 = por %p173, %p174
      %p176 = scmp.ne.s32.totalorder %s164, %s165
      %p177 = scmp.eq.s32.totalorder %s29, 1
      %p178 = por %p176, %p177
      %p180 = scmp.ne.s32.totalorder %s165, %s179
      %p181 = scmp.eq.s32.totalorder %s29, 0
      %p182 = por %p180, %p181
      %s184 = sadd.s32 %s183, 1
      %p187 = scmp.eq.s32.totalorder %s23, 1
      %p188 = scmp.ne.s32.totalorder %s183, %s185
      %p189 = scmp.eq.s32.totalorder %s23, 0
      %p190 = por %p188, %p189
      %p191 = scmp.ne.s32.totalorder %s183, %s185
      %p192 = scmp.eq.s32.totalorder %s28, 1
      %p193 = por %p191, %p192
      %p194 = scmp.ne.s32.totalorder %s185, %s186
      %p195 = scmp.eq.s32.totalorder %s28, 0
      %p196 = por %p194, %p195
      %p197 = scmp.ne.s32.totalorder %s185, %s186
      %p198 = scmp.eq.s32.totalorder %s29, 1
      %p199 = por %p197, %p198
      %p201 = scmp.ne.s32.totalorder %s186, %s200
      %p202 = scmp.eq.s32.totalorder %s29, 0
      %p203 = por %p201, %p202
      %s205 = sadd.s32 %s204, 1
      %p208 = scmp.eq.s32.totalorder %s23, 1
      %p209 = scmp.ne.s32.totalorder %s204, %s206
      %p210 = scmp.eq.s32.totalorder %s23, 0
      %p211 = por %p209, %p210
      %p212 = scmp.ne.s32.totalorder %s204, %s206
      %p213 = scmp.eq.s32.totalorder %s28, 1
      %p214 = por %p212, %p213
      %p215 = scmp.ne.s32.totalorder %s206, %s207
      %p216 = scmp.eq.s32.totalorder %s28, 0
      %p217 = por %p215, %p216
      %p218 = scmp.ne.s32.totalorder %s206, %s207
      %p219 = scmp.eq.s32.totalorder %s29, 1
      %p220 = por %p218, %p219
      %p222 = scmp.ne.s32.totalorder %s207, %s221
      %p223 = scmp.eq.s32.totalorder %s29, 0
      %p224 = por %p222, %p223
      %s225 = ssub.s32 %s23, %s30
      %p226 = scmp.eq.s32.totalorder %s225, 0
      %s228 = sadd.s32 %s227, 1
      %s229 = scalar_select %p226, %s227, %s228
      %p232 = pneg %p226
      %p233 = scmp.eq.s32.totalorder %s23, 1
      %p234 = por %p232, %p233
      %p235 = scmp.ne.s32.totalorder %s227, %s230
      %p236 = scmp.eq.s32.totalorder %s23, 0
      %p237 = por %p235, %p236
      %p238 = scmp.ne.s32.totalorder %s227, %s230
      %p239 = scmp.eq.s32.totalorder %s28, 1
      %p240 = por %p238, %p239
      %p241 = scmp.ne.s32.totalorder %s230, %s231
      %p242 = scmp.eq.s32.totalorder %s28, 0
      %p243 = por %p241, %p242
      %p244 = scmp.ne.s32.totalorder %s230, %s231
      %p245 = scmp.eq.s32.totalorder %s29, 1
      %p246 = por %p244, %p245
      %p248 = scmp.ne.s32.totalorder %s231, %s247
      %p249 = scmp.eq.s32.totalorder %s29, 0
      %p250 = por %p248, %p249
      %p251 = scmp.le.s32.totalorder 1, %s23
      %p252 = scmp.lt.s32.totalorder %s23, 3
      %p253 = pnand %p251, %p252
      %p254 = pneg %p253
      // Predicated region
      $region9: #{tpu_custom_call.1} parent=5 // pred_check
        _
      $region10: #{tpu_custom_call.1} parent=5 // pred_check_branch
        %256 = sbr.rel (%p253) target = $region12
      $region11: #{tpu_custom_call.1} parent=5 // pred_region
        %s257 = ssub.s32 %s23, 1
        // Predicated region
        $region13: #{tpu_custom_call.1} parent=11 // pred_check
          %p258 = pneg %p70
        $region14: #{tpu_custom_call.1} parent=11 // pred_check_branch
          %260 = sbr.rel (%p258) target = $region16
        $region15: #{tpu_custom_call.1} parent=11 // pred_region
          %262 = vsyncadd [#allocation9], 0
          %s263 = sshll.u32 %s1, 4
          %s264 = int_to_ptr.hbm [resolvable:$true] %s263
          %s265 = sshll.u32 [#allocation8], 4
          %s266 = int_to_ptr.vmem [resolvable:$true] %s265
          %271 = dma.hbm_to_vmem [thread:$0]  %s264, 6144, %s266, [#allocation9], 128, 128, 8
        $region16: #{tpu_custom_call.1} parent=11 // pred_fallthru
          _
        // Predicated region
        $region17: #{tpu_custom_call.1} parent=11 // pred_check
          %p272 = pneg %p91
        $region18: #{tpu_custom_call.1} parent=11 // pred_check_branch
          %274 = sbr.rel (%p272) target = $region20
        $region19: #{tpu_custom_call.1} parent=11 // pred_region
          _
        $region20: #{tpu_custom_call.1} parent=11 // pred_fallthru
          _
        // Predicated region
        $region21: #{tpu_custom_call.1} parent=11 // pred_check
          %p275 = pneg %p112
        $region22: #{tpu_custom_call.1} parent=11 // pred_check_branch
          %277 = sbr.rel (%p275) target = $region24
        $region23: #{tpu_custom_call.1} parent=11 // pred_region
          _
        $region24: #{tpu_custom_call.1} parent=11 // pred_fallthru
          _
        // Predicated region
        $region25: #{tpu_custom_call.1} parent=11 // pred_check
          %p278 = pneg %p133
        $region26: #{tpu_custom_call.1} parent=11 // pred_check_branch
          %280 = sbr.rel (%p278) target = $region28
        $region27: #{tpu_custom_call.1} parent=11 // pred_region
          %282 = vsyncadd [#allocation9], 0
          %s283 = sshll.u32 %s4, 4
          %s284 = int_to_ptr.hbm [resolvable:$true] %s283
          %s285 = sshll.u32 [#allocation10], 4
          %s286 = int_to_ptr.vmem [resolvable:$true] %s285
          %291 = dma.hbm_to_vmem [thread:$0]  %s284, 6144, %s286, [#allocation9], 128, 128, 8
        $region28: #{tpu_custom_call.1} parent=11 // pred_fallthru
          _
        // Predicated region
        $region29: #{tpu_custom_call.1} parent=11 // pred_check
          %p292 = pneg %p154
        $region30: #{tpu_custom_call.1} parent=11 // pred_check_branch
          %294 = sbr.rel (%p292) target = $region32
        $region31: #{tpu_custom_call.1} parent=11 // pred_region
          _
        $region32: #{tpu_custom_call.1} parent=11 // pred_fallthru
          _
        // Predicated region
        $region33: #{tpu_custom_call.1} parent=11 // pred_check
          %p295 = pneg %p175
        $region34: #{tpu_custom_call.1} parent=11 // pred_check_branch
          %297 = sbr.rel (%p295) target = $region36
        $region35: #{tpu_custom_call.1} parent=11 // pred_region
          _
        $region36: #{tpu_custom_call.1} parent=11 // pred_fallthru
          _
        // Predicated region
        $region37: #{tpu_custom_call.1} parent=11 // pred_check
          %p298 = pneg %p196
        $region38: #{tpu_custom_call.1} parent=11 // pred_check_branch
          %300 = sbr.rel (%p298) target = $region40
        $region39: #{tpu_custom_call.1} parent=11 // pred_region
          %302 = vsyncadd [#allocation12], 0
          %s303 = sshll.u32 %s7, 4
          %s304 = int_to_ptr.hbm [resolvable:$true] %s303
          %s305 = sshll.u32 [#allocation11], 4
          %s306 = int_to_ptr.vmem [resolvable:$true] %s305
          %311 = dma.hbm_to_vmem [thread:$0]  %s304, 2048, %s306, [#allocation12], 128, 128, 8
        $region40: #{tpu_custom_call.1} parent=11 // pred_fallthru
          _
        // Predicated region
        $region41: #{tpu_custom_call.1} parent=11 // pred_check
          %p312 = pneg %p217
        $region42: #{tpu_custom_call.1} parent=11 // pred_check_branch
          %314 = sbr.rel (%p312) target = $region44
        $region43: #{tpu_custom_call.1} parent=11 // pred_region
          _
        $region44: #{tpu_custom_call.1} parent=11 // pred_fallthru
          _
      $region12: #{tpu_custom_call.1} parent=5 // pred_fallthru
        _
      %p315 = scmp.lt.s32.totalorder %s23, 2
      // Predicated region
      $region45: #{tpu_custom_call.1} parent=5 // pred_check
        %p316 = pneg %p315
      $region46: #{tpu_custom_call.1} parent=5 // pred_check_branch
        %318 = sbr.rel (%p316) target = $region48
      $region47: #{tpu_custom_call.1} parent=5 // pred_region
        // Predicated region
        $region49: #{tpu_custom_call.1} parent=47 // pred_check
          %p319 = pneg %p43
        $region50: #{tpu_custom_call.1} parent=47 // pred_check_branch
          %321 = sbr.rel (%p319) target = $region52
        $region51: #{tpu_custom_call.1} parent=47 // pred_region
          %s322 = sand.u32 %s33, 1
          %s323 = scalar_lea.sflag [#allocation6], %s322
          %s324 = sand.u32 %s33, 1
          %s325 = smul.addr %s324, 16
          %s326 = scalar_lea.vmem [#allocation5], %s325
          %328 = vsyncadd %s323, 0
          %s329 = smul.addr %s23, 2
          %s330 = smul.addr %s329, 8
          %s331 = scalar_lea.hbm %s0, %s330
          %s332 = sshll.u32 %s331, 4
          %s333 = int_to_ptr.hbm [resolvable:$true] %s332
          %s334 = sshll.u32 %s326, 4
          %s335 = int_to_ptr.vmem [resolvable:$true] %s334
          %340 = dma.hbm_to_vmem [thread:$0]  %s333, 256, %s335, %s323, 128, 128, 8
        $region52: #{tpu_custom_call.1} parent=47 // pred_fallthru
          _
      $region48: #{tpu_custom_call.1} parent=5 // pred_fallthru
        _
      %p341 = scmp.le.s32.totalorder 1, %s23
      %p342 = scmp.lt.s32.totalorder %s23, 3
      %p343 = pnand %p341, %p342
      %p344 = pneg %p343
      // Predicated region
      $region53: #{tpu_custom_call.1} parent=5 // pred_check
        _
      $region54: #{tpu_custom_call.1} parent=5 // pred_check_branch
        %346 = sbr.rel (%p343) target = $region56
      $region55: #{tpu_custom_call.1} parent=5 // pred_region
        %s347 = ssub.s32 %s23, 1
        %s348 = sand.u32 %s36, 1
        %s349 = scalar_lea.sflag [#allocation6], %s348
        %s350 = sand.u32 %s36, 1
        %s351 = smul.addr %s350, 16
        %s352 = scalar_lea.vmem [#allocation5], %s351
        // Predicated region
        $region57: #{tpu_custom_call.1} parent=55 // pred_check
          %p353 = pneg %p49
        $region58: #{tpu_custom_call.1} parent=55 // pred_check_branch
          %355 = sbr.rel (%p353) target = $region60
        $region59: #{tpu_custom_call.1} parent=55 // pred_region
          %357 = dma.done %s349, 256
        $region60: #{tpu_custom_call.1} parent=55 // pred_fallthru
          _
        // Predicated region
        $region61: #{tpu_custom_call.1} parent=55 // pred_check
          %p358 = pneg %p70
        $region62: #{tpu_custom_call.1} parent=55 // pred_check_branch
          %360 = sbr.rel (%p358) target = $region64
        $region63: #{tpu_custom_call.1} parent=55 // pred_region
          %362 = dma.done [#allocation9], 6144
        $region64: #{tpu_custom_call.1} parent=55 // pred_fallthru
          _
        // Predicated region
        $region65: #{tpu_custom_call.1} parent=55 // pred_check
          %p363 = pneg %p133
        $region66: #{tpu_custom_call.1} parent=55 // pred_check_branch
          %365 = sbr.rel (%p363) target = $region68
        $region67: #{tpu_custom_call.1} parent=55 // pred_region
          %367 = dma.done [#allocation9], 6144
        $region68: #{tpu_custom_call.1} parent=55 // pred_fallthru
          _
        // Predicated region
        $region69: #{tpu_custom_call.1} parent=55 // pred_check
          %p368 = pneg %p196
        $region70: #{tpu_custom_call.1} parent=55 // pred_check_branch
          %370 = sbr.rel (%p368) target = $region72
        $region71: #{tpu_custom_call.1} parent=55 // pred_region
          %372 = dma.done [#allocation12], 2048
        $region72: #{tpu_custom_call.1} parent=55 // pred_fallthru
          _
        %s373 = sand.u32 %s36, 1
        %s374 = scalar_lea.sflag [#allocation6], %s373
        %s375 = sand.u32 %s36, 1
        %s376 = smul.addr %s375, 16
        %s377 = scalar_lea.vmem [#allocation5], %s376
        %p378 = pneg %p49
        %p379 = pneg %p46
        %p380 = pneg %p70
        %p381 = pneg %p67
        %p382 = pneg %p91
        %p383 = pneg %p88
        %p384 = pneg %p112
        %p385 = pneg %p109
        %p386 = pneg %p133
        %p387 = pneg %p130
        %p388 = pneg %p154
        %p389 = pneg %p151
        %p390 = pneg %p175
        %p391 = pneg %p172
        %p392 = pneg %p196
        %p393 = pneg %p193
        %p394 = pneg %p217
        %p395 = pneg %p214
        %p396 = pneg %p243
        %p397 = pneg %p240
        %s398 = sand.u32 %s230, 1
        %s399 = scalar_lea.sflag [#allocation7], %s398
        %s400 = sand.u32 %s230, 1
        %s401 = smul.addr %s400, 16
        %s402 = scalar_lea.vmem [#allocation13], %s401
        %403 = vst [vmem:[#allocation2] sm:$0x1] 0.0
        %v404 = vld [vmem:[%s352] sm:$0xff]
        %v405 = vld [vmem:[%s352 + $0x8] sm:$0x7f]
        %vm408 = vcmask 1040384
        %v409 = vrot.slane %v404, 7
        %v410 = vrot.slane %v405, 7
        %v411 = vsel %vm408, %v409, %v410
        %414 = vst [vmem:[#allocation2] sm:$0xfe] %v409
        %415 = vst [vmem:[#allocation2 + $0x18] sm:$0xff] %v411
        %v416 = vld [vmem:[%s352] sm:$0xff]
        %v417 = vld [vmem:[%s352 + $0x8] sm:$0xff]
        %418 = vst [vmem:[#allocation2 + $0x8] sm:$0xff] %v416
        %419 = vst [vmem:[#allocation2 + $0x20] sm:$0xff] %v417
        %420 = vst [vmem:[#allocation2 + $0x2f] sm:$0x1] 0.0
        %v421 = vld [vmem:[%s352 + $0x1] sm:$0xff]
        %v422 = vld [vmem:[%s352 + $0x9] sm:$0x7f]
        %423 = vst [vmem:[#allocation2 + $0x10] sm:$0xff] %v421
        %424 = vst [vmem:[#allocation2 + $0x28] sm:$0x7f] %v422
        %v425 = vld [vmem:[#allocation2] sm:$0xff]
        %v426 = vld [vmem:[#allocation2 + $0x8] sm:$0xff]
        %v427 = vld [vmem:[#allocation2 + $0x10] sm:$0xff]
        %v428 = vld [vmem:[#allocation2 + $0x18] sm:$0xff]
        %v429 = vld [vmem:[#allocation2 + $0x20] sm:$0xff]
        %v430 = vld [vmem:[#allocation2 + $0x28] sm:$0xff]
        %v431 = vld [vmem:[#allocation8] sm:$0xff]
        %v432 = vld [vmem:[#allocation8 + $0x8] sm:$0xff]
        %v433 = vld [vmem:[#allocation8 + $0x10] sm:$0xff]
        %v434 = vld [vmem:[#allocation8 + $0x18] sm:$0xff]
        %v435 = vld [vmem:[#allocation8 + $0x20] sm:$0xff]
        %v436 = vld [vmem:[#allocation8 + $0x28] sm:$0xff]
        %v437 = vld [vmem:[#allocation8 + $0x30] sm:$0xff]
        %v438 = vld [vmem:[#allocation8 + $0x38] sm:$0xff]
        %v439 = vld [vmem:[#allocation8 + $0x40] sm:$0xff]
        %v440 = vld [vmem:[#allocation8 + $0x48] sm:$0xff]
        %v441 = vld [vmem:[#allocation8 + $0x50] sm:$0xff]
        %v442 = vld [vmem:[#allocation8 + $0x58] sm:$0xff]
        %v443 = vld [vmem:[#allocation8 + $0x60] sm:$0xff]
        %v444 = vld [vmem:[#allocation8 + $0x68] sm:$0xff]
        %v445 = vld [vmem:[#allocation8 + $0x70] sm:$0xff]
        %v446 = vld [vmem:[#allocation8 + $0x78] sm:$0xff]
        %v447 = vld [vmem:[#allocation8 + $0x80] sm:$0xff]
        %v448 = vld [vmem:[#allocation8 + $0x88] sm:$0xff]
        %v449 = vld [vmem:[#allocation8 + $0x90] sm:$0xff]
        %v450 = vld [vmem:[#allocation8 + $0x98] sm:$0xff]
        %v451 = vld [vmem:[#allocation8 + $0xa0] sm:$0xff]
        %v452 = vld [vmem:[#allocation8 + $0xa8] sm:$0xff]
        %v453 = vld [vmem:[#allocation8 + $0xb0] sm:$0xff]
        %v454 = vld [vmem:[#allocation8 + $0xb8] sm:$0xff]
        %v455 = vld [vmem:[#allocation8 + $0xc0] sm:$0xff]
        %v456 = vld [vmem:[#allocation8 + $0xc8] sm:$0xff]
        %v457 = vld [vmem:[#allocation8 + $0xd0] sm:$0xff]
        %v458 = vld [vmem:[#allocation8 + $0xd8] sm:$0xff]
        %v459 = vld [vmem:[#allocation8 + $0xe0] sm:$0xff]
        %v460 = vld [vmem:[#allocation8 + $0xe8] sm:$0xff]
        %v461 = vld [vmem:[#allocation8 + $0xf0] sm:$0xff]
        %v462 = vld [vmem:[#allocation8 + $0xf8] sm:$0xff]
        %v463 = vld [vmem:[#allocation8 + $0x100] sm:$0xff]
        %v464 = vld [vmem:[#allocation8 + $0x108] sm:$0xff]
        %v465 = vld [vmem:[#allocation8 + $0x110] sm:$0xff]
        %v466 = vld [vmem:[#allocation8 + $0x118] sm:$0xff]
        %v467 = vld [vmem:[#allocation8 + $0x120] sm:$0xff]
        %v468 = vld [vmem:[#allocation8 + $0x128] sm:$0xff]
        %v469 = vld [vmem:[#allocation8 + $0x130] sm:$0xff]
        %v470 = vld [vmem:[#allocation8 + $0x138] sm:$0xff]
        %v471 = vld [vmem:[#allocation8 + $0x140] sm:$0xff]
        %v472 = vld [vmem:[#allocation8 + $0x148] sm:$0xff]
        %v473 = vld [vmem:[#allocation8 + $0x150] sm:$0xff]
        %v474 = vld [vmem:[#allocation8 + $0x158] sm:$0xff]
        %v475 = vld [vmem:[#allocation8 + $0x160] sm:$0xff]
        %v476 = vld [vmem:[#allocation8 + $0x168] sm:$0xff]
        %v477 = vld [vmem:[#allocation8 + $0x170] sm:$0xff]
        %v478 = vld [vmem:[#allocation8 + $0x178] sm:$0xff]
        %479 = vmatpush.msra.mxu0 %v446
        %480 = vmatpush.msra.mxu0 %v445
        %481 = vmatpush.msra.mxu0 %v444
        %482 = vmatpush.msra.mxu0 %v443
        %483 = vmatpush.msra.mxu0 %v442
        %484 = vmatpush.msra.mxu0 %v441
        %485 = vmatpush.msra.mxu0 %v440
        %486 = vmatpush.msra.mxu0 %v439
        %487 = vmatpush.msra.mxu0 %v438
        %488 = vmatpush.msra.mxu0 %v437
        %489 = vmatpush.msra.mxu0 %v436
        %490 = vmatpush.msra.mxu0 %v435
        %491 = vmatpush.msra.mxu0 %v434
        %492 = vmatpush.msra.mxu0 %v433
        %493 = vmatpush.msra.mxu0 %v432
        %494 = vmatpush.msra.mxu0 %v431
        %495 = vmatmul.f32.gmra.mxu0 %v425
        %v496 = vpop.f32.mrf.mxu0
        %v497 = vadd.f32 0.0, %v496
        %498 = vmatmul.f32.gmra.mxu0 %v428
        %v499 = vpop.f32.mrf.mxu0
        %v500 = vadd.f32 0.0, %v499
        %501 = vdwg.mxu0
        %502 = vmatpush.msra.mxu0 %v462
        %503 = vmatpush.msra.mxu0 %v461
        %504 = vmatpush.msra.mxu0 %v460
        %505 = vmatpush.msra.mxu0 %v459
        %506 = vmatpush.msra.mxu0 %v458
        %507 = vmatpush.msra.mxu0 %v457
        %508 = vmatpush.msra.mxu0 %v456
        %509 = vmatpush.msra.mxu0 %v455
        %510 = vmatpush.msra.mxu0 %v454
        %511 = vmatpush.msra.mxu0 %v453
        %512 = vmatpush.msra.mxu0 %v452
        %513 = vmatpush.msra.mxu0 %v451
        %514 = vmatpush.msra.mxu0 %v450
        %515 = vmatpush.msra.mxu0 %v449
        %516 = vmatpush.msra.mxu0 %v448
        %517 = vmatpush.msra.mxu0 %v447
        %518 = vmatmul.f32.gmra.mxu0 %v426
        %v519 = vpop.f32.mrf.mxu0
        %v520 = vadd.f32 %v497, %v519
        %521 = vmatmul.f32.gmra.mxu0 %v429
        %v522 = vpop.f32.mrf.mxu0
        %v523 = vadd.f32 %v500, %v522
        %524 = vdwg.mxu0
        %525 = vmatpush.msra.mxu0 %v478
        %526 = vmatpush.msra.mxu0 %v477
        %527 = vmatpush.msra.mxu0 %v476
        %528 = vmatpush.msra.mxu0 %v475
        %529 = vmatpush.msra.mxu0 %v474
        %530 = vmatpush.msra.mxu0 %v473
        %531 = vmatpush.msra.mxu0 %v472
        %532 = vmatpush.msra.mxu0 %v471
        %533 = vmatpush.msra.mxu0 %v470
        %534 = vmatpush.msra.mxu0 %v469
        %535 = vmatpush.msra.mxu0 %v468
        %536 = vmatpush.msra.mxu0 %v467
        %537 = vmatpush.msra.mxu0 %v466
        %538 = vmatpush.msra.mxu0 %v465
        %539 = vmatpush.msra.mxu0 %v464
        %540 = vmatpush.msra.mxu0 %v463
        %541 = vmatmul.f32.gmra.mxu0 %v427
        %v542 = vpop.f32.mrf.mxu0
        %v543 = vadd.f32 %v520, %v542
        %544 = vmatmul.f32.gmra.mxu0 %v430
        %v545 = vpop.f32.mrf.mxu0
        %v546 = vadd.f32 %v523, %v545
        %547 = vdwg.mxu0
        %v548 = vld [vmem:[%s2] sm:$0x1]
        %v550 = vperm.slane %v548, 0
        %v552 = vmul.f32 %v543, %v550
        %v553 = vmul.f32 %v546, %v550
        %v554 = vld [vmem:[%s3] sm:$0x1]
        %v556 = vperm.slane %v554, 0
        %v558 = vadd.f32 %v552, %v556
        %v559 = vadd.f32 %v553, %v556
        %v560 = vmul.f32 %v558, 0.2
        %v561 = vmul.f32 %v559, 0.2
        %v562 = vmax.f32 %v558, %v560
        %v563 = vmax.f32 %v559, %v561
        %564 = vst [vmem:[#allocation3] sm:$0xff] %v562
        %565 = vst [vmem:[#allocation3 + $0x8] sm:$0xff] %v563
        %566 = vst [vmem:[#allocation4] sm:$0x1] 0.0
        %v567 = vld [vmem:[#allocation3] sm:$0xff]
        %v568 = vld [vmem:[#allocation3 + $0x8] sm:$0x7f]
        %v571 = vrot.slane %v567, 7
        %v572 = vrot.slane %v568, 7
        %v573 = vsel %vm408, %v571, %v572
        %576 = vst [vmem:[#allocation4] sm:$0xfe] %v571
        %577 = vst [vmem:[#allocation4 + $0x18] sm:$0xff] %v573
        %v578 = vld [vmem:[#allocation3] sm:$0xff]
        %v579 = vld [vmem:[#allocation3 + $0x8] sm:$0xff]
        %580 = vst [vmem:[#allocation4 + $0x8] sm:$0xff] %v578
        %581 = vst [vmem:[#allocation4 + $0x20] sm:$0xff] %v579
        %582 = vst [vmem:[#allocation4 + $0x2f] sm:$0x1] 0.0
        %v583 = vld [vmem:[#allocation3 + $0x1] sm:$0xff]
        %v584 = vld [vmem:[#allocation3 + $0x9] sm:$0x7f]
        %585 = vst [vmem:[#allocation4 + $0x10] sm:$0xff] %v583
        %586 = vst [vmem:[#allocation4 + $0x28] sm:$0x7f] %v584
        %v587 = vld [vmem:[#allocation4] sm:$0xff]
        %v588 = vld [vmem:[#allocation4 + $0x8] sm:$0xff]
        %v589 = vld [vmem:[#allocation4 + $0x10] sm:$0xff]
        %v590 = vld [vmem:[#allocation4 + $0x18] sm:$0xff]
        %v591 = vld [vmem:[#allocation4 + $0x20] sm:$0xff]
        %v592 = vld [vmem:[#allocation4 + $0x28] sm:$0xff]
        %v593 = vld [vmem:[#allocation10] sm:$0xff]
        %v594 = vld [vmem:[#allocation10 + $0x8] sm:$0xff]
        %v595 = vld [vmem:[#allocation10 + $0x10] sm:$0xff]
        %v596 = vld [vmem:[#allocation10 + $0x18] sm:$0xff]
        %v597 = vld [vmem:[#allocation10 + $0x20] sm:$0xff]
        %v598 = vld [vmem:[#allocation10 + $0x28] sm:$0xff]
        %v599 = vld [vmem:[#allocation10 + $0x30] sm:$0xff]
        %v600 = vld [vmem:[#allocation10 + $0x38] sm:$0xff]
        %v601 = vld [vmem:[#allocation10 + $0x40] sm:$0xff]
        %v602 = vld [vmem:[#allocation10 + $0x48] sm:$0xff]
        %v603 = vld [vmem:[#allocation10 + $0x50] sm:$0xff]
        %v604 = vld [vmem:[#allocation10 + $0x58] sm:$0xff]
        %v605 = vld [vmem:[#allocation10 + $0x60] sm:$0xff]
        %v606 = vld [vmem:[#allocation10 + $0x68] sm:$0xff]
        %v607 = vld [vmem:[#allocation10 + $0x70] sm:$0xff]
        %v608 = vld [vmem:[#allocation10 + $0x78] sm:$0xff]
        %v609 = vld [vmem:[#allocation10 + $0x80] sm:$0xff]
        %v610 = vld [vmem:[#allocation10 + $0x88] sm:$0xff]
        %v611 = vld [vmem:[#allocation10 + $0x90] sm:$0xff]
        %v612 = vld [vmem:[#allocation10 + $0x98] sm:$0xff]
        %v613 = vld [vmem:[#allocation10 + $0xa0] sm:$0xff]
        %v614 = vld [vmem:[#allocation10 + $0xa8] sm:$0xff]
        %v615 = vld [vmem:[#allocation10 + $0xb0] sm:$0xff]
        %v616 = vld [vmem:[#allocation10 + $0xb8] sm:$0xff]
        %v617 = vld [vmem:[#allocation10 + $0xc0] sm:$0xff]
        %v618 = vld [vmem:[#allocation10 + $0xc8] sm:$0xff]
        %v619 = vld [vmem:[#allocation10 + $0xd0] sm:$0xff]
        %v620 = vld [vmem:[#allocation10 + $0xd8] sm:$0xff]
        %v621 = vld [vmem:[#allocation10 + $0xe0] sm:$0xff]
        %v622 = vld [vmem:[#allocation10 + $0xe8] sm:$0xff]
        %v623 = vld [vmem:[#allocation10 + $0xf0] sm:$0xff]
        %v624 = vld [vmem:[#allocation10 + $0xf8] sm:$0xff]
        %v625 = vld [vmem:[#allocation10 + $0x100] sm:$0xff]
        %v626 = vld [vmem:[#allocation10 + $0x108] sm:$0xff]
        %v627 = vld [vmem:[#allocation10 + $0x110] sm:$0xff]
        %v628 = vld [vmem:[#allocation10 + $0x118] sm:$0xff]
        %v629 = vld [vmem:[#allocation10 + $0x120] sm:$0xff]
        %v630 = vld [vmem:[#allocation10 + $0x128] sm:$0xff]
        %v631 = vld [vmem:[#allocation10 + $0x130] sm:$0xff]
        %v632 = vld [vmem:[#allocation10 + $0x138] sm:$0xff]
        %v633 = vld [vmem:[#allocation10 + $0x140] sm:$0xff]
        %v634 = vld [vmem:[#allocation10 + $0x148] sm:$0xff]
        %v635 = vld [vmem:[#allocation10 + $0x150] sm:$0xff]
        %v636 = vld [vmem:[#allocation10 + $0x158] sm:$0xff]
        %v637 = vld [vmem:[#allocation10 + $0x160] sm:$0xff]
        %v638 = vld [vmem:[#allocation10 + $0x168] sm:$0xff]
        %v639 = vld [vmem:[#allocation10 + $0x170] sm:$0xff]
        %v640 = vld [vmem:[#allocation10 + $0x178] sm:$0xff]
        %641 = vmatpush.msra.mxu0 %v608
        %642 = vmatpush.msra.mxu0 %v607
        %643 = vmatpush.msra.mxu0 %v606
        %644 = vmatpush.msra.mxu0 %v605
        %645 = vmatpush.msra.mxu0 %v604
        %646 = vmatpush.msra.mxu0 %v603
        %647 = vmatpush.msra.mxu0 %v602
        %648 = vmatpush.msra.mxu0 %v601
        %649 = vmatpush.msra.mxu0 %v600
        %650 = vmatpush.msra.mxu0 %v599
        %651 = vmatpush.msra.mxu0 %v598
        %652 = vmatpush.msra.mxu0 %v597
        %653 = vmatpush.msra.mxu0 %v596
        %654 = vmatpush.msra.mxu0 %v595
        %655 = vmatpush.msra.mxu0 %v594
        %656 = vmatpush.msra.mxu0 %v593
        %657 = vmatmul.f32.gmra.mxu0 %v587
        %v658 = vpop.f32.mrf.mxu0
        %v659 = vadd.f32 0.0, %v658
        %660 = vmatmul.f32.gmra.mxu0 %v590
        %v661 = vpop.f32.mrf.mxu0
        %v662 = vadd.f32 0.0, %v661
        %663 = vdwg.mxu0
        %664 = vmatpush.msra.mxu0 %v624
        %665 = vmatpush.msra.mxu0 %v623
        %666 = vmatpush.msra.mxu0 %v622
        %667 = vmatpush.msra.mxu0 %v621
        %668 = vmatpush.msra.mxu0 %v620
        %669 = vmatpush.msra.mxu0 %v619
        %670 = vmatpush.msra.mxu0 %v618
        %671 = vmatpush.msra.mxu0 %v617
        %672 = vmatpush.msra.mxu0 %v616
        %673 = vmatpush.msra.mxu0 %v615
        %674 = vmatpush.msra.mxu0 %v614
        %675 = vmatpush.msra.mxu0 %v613
        %676 = vmatpush.msra.mxu0 %v612
        %677 = vmatpush.msra.mxu0 %v611
        %678 = vmatpush.msra.mxu0 %v610
        %679 = vmatpush.msra.mxu0 %v609
        %680 = vmatmul.f32.gmra.mxu0 %v588
        %v681 = vpop.f32.mrf.mxu0
        %v682 = vadd.f32 %v659, %v681
        %683 = vmatmul.f32.gmra.mxu0 %v591
        %v684 = vpop.f32.mrf.mxu0
        %v685 = vadd.f32 %v662, %v684
        %686 = vdwg.mxu0
        %687 = vmatpush.msra.mxu0 %v640
        %688 = vmatpush.msra.mxu0 %v639
        %689 = vmatpush.msra.mxu0 %v638
        %690 = vmatpush.msra.mxu0 %v637
        %691 = vmatpush.msra.mxu0 %v636
        %692 = vmatpush.msra.mxu0 %v635
        %693 = vmatpush.msra.mxu0 %v634
        %694 = vmatpush.msra.mxu0 %v633
        %695 = vmatpush.msra.mxu0 %v632
        %696 = vmatpush.msra.mxu0 %v631
        %697 = vmatpush.msra.mxu0 %v630
        %698 = vmatpush.msra.mxu0 %v629
        %699 = vmatpush.msra.mxu0 %v628
        %700 = vmatpush.msra.mxu0 %v627
        %701 = vmatpush.msra.mxu0 %v626
        %702 = vmatpush.msra.mxu0 %v625
        %703 = vmatmul.f32.gmra.mxu0 %v589
        %v704 = vpop.f32.mrf.mxu0
        %v705 = vadd.f32 %v682, %v704
        %706 = vmatmul.f32.gmra.mxu0 %v592
        %v707 = vpop.f32.mrf.mxu0
        %v708 = vadd.f32 %v685, %v707
        %709 = vdwg.mxu0
        %v710 = vld [vmem:[%s5] sm:$0x1]
        %v712 = vperm.slane %v710, 0
        %v714 = vmul.f32 %v705, %v712
        %v715 = vmul.f32 %v708, %v712
        %v716 = vld [vmem:[%s6] sm:$0x1]
        %v718 = vperm.slane %v716, 0
        %v720 = vadd.f32 %v714, %v718
        %v721 = vadd.f32 %v715, %v718
        %v722 = vld [vmem:[%s352] sm:$0xff]
        %v723 = vld [vmem:[%s352 + $0x8] sm:$0xff]
        %v724 = vld [vmem:[#allocation11] sm:$0xff]
        %v725 = vld [vmem:[#allocation11 + $0x8] sm:$0xff]
        %v726 = vld [vmem:[#allocation11 + $0x10] sm:$0xff]
        %v727 = vld [vmem:[#allocation11 + $0x18] sm:$0xff]
        %v728 = vld [vmem:[#allocation11 + $0x20] sm:$0xff]
        %v729 = vld [vmem:[#allocation11 + $0x28] sm:$0xff]
        %v730 = vld [vmem:[#allocation11 + $0x30] sm:$0xff]
        %v731 = vld [vmem:[#allocation11 + $0x38] sm:$0xff]
        %v732 = vld [vmem:[#allocation11 + $0x40] sm:$0xff]
        %v733 = vld [vmem:[#allocation11 + $0x48] sm:$0xff]
        %v734 = vld [vmem:[#allocation11 + $0x50] sm:$0xff]
        %v735 = vld [vmem:[#allocation11 + $0x58] sm:$0xff]
        %v736 = vld [vmem:[#allocation11 + $0x60] sm:$0xff]
        %v737 = vld [vmem:[#allocation11 + $0x68] sm:$0xff]
        %v738 = vld [vmem:[#allocation11 + $0x70] sm:$0xff]
        %v739 = vld [vmem:[#allocation11 + $0x78] sm:$0xff]
        %v740 = vld [vmem:[%s8] sm:$0x1]
        %v742 = vperm.slane %v740, 0
        %744 = vmatpush.msra.mxu0 %v739
        %745 = vmatpush.msra.mxu0 %v738
        %746 = vmatpush.msra.mxu0 %v737
        %747 = vmatpush.msra.mxu0 %v736
        %748 = vmatpush.msra.mxu0 %v735
        %749 = vmatpush.msra.mxu0 %v734
        %750 = vmatpush.msra.mxu0 %v733
        %751 = vmatpush.msra.mxu0 %v732
        %752 = vmatpush.msra.mxu0 %v731
        %753 = vmatpush.msra.mxu0 %v730
        %754 = vmatpush.msra.mxu0 %v729
        %755 = vmatpush.msra.mxu0 %v728
        %756 = vmatpush.msra.mxu0 %v727
        %757 = vmatpush.msra.mxu0 %v726
        %758 = vmatpush.msra.mxu0 %v725
        %759 = vmatpush.msra.mxu0 %v724
        %760 = vmatmul.f32.gmra.mxu0 %v722
        %v761 = vpop.f32.mrf.mxu0
        %v762 = vadd.f32 %v742, %v761
        %763 = vmatmul.f32.gmra.mxu0 %v723
        %v764 = vpop.f32.mrf.mxu0
        %v765 = vadd.f32 %v742, %v764
        %766 = vdwg.mxu0
        %v767 = vadd.f32 %v720, %v762
        %v768 = vadd.f32 %v721, %v765
        %v769 = vmul.f32 %v767, 0.2
        %v770 = vmul.f32 %v768, 0.2
        %v771 = vmax.f32 %v767, %v769
        %v772 = vmax.f32 %v768, %v770
        %773 = vst [vmem:[%s402] sm:$0xff] %v771
        %774 = vst [vmem:[%s402 + $0x8] sm:$0xff] %v772
        %s775 = sand.u32 %s230, 1
        %s776 = scalar_lea.sflag [#allocation7], %s775
        %s777 = sand.u32 %s230, 1
        %s778 = smul.addr %s777, 16
        %s779 = scalar_lea.vmem [#allocation13], %s778
        // Predicated region
        $region73: #{tpu_custom_call.1} parent=55 // pred_check
          %p780 = pneg %p240
        $region74: #{tpu_custom_call.1} parent=55 // pred_check_branch
          %782 = sbr.rel (%p780) target = $region76
        $region75: #{tpu_custom_call.1} parent=55 // pred_region
          %784 = vsyncadd %s776, 0
          %s785 = smul.addr %s28, 2
          %s786 = smul.addr %s785, 8
          %s787 = scalar_lea.hbm %s9, %s786
          %s788 = sshll.u32 %s779, 4
          %s789 = int_to_ptr.vmem [resolvable:$true] %s788
          %s790 = sshll.u32 %s787, 4
          %s791 = int_to_ptr.hbm [resolvable:$true] %s790
          %796 = dma.vmem_to_hbm [thread:$0]  %s789, 256, %s791, %s776, 128, 128, 8
        $region76: #{tpu_custom_call.1} parent=55 // pred_fallthru
          _
      $region56: #{tpu_custom_call.1} parent=5 // pred_fallthru
        _
      %p797 = scmp.le.s32.totalorder 2, %s23
      // Predicated region
      $region77: #{tpu_custom_call.1} parent=5 // pred_check
        %p798 = pneg %p797
      $region78: #{tpu_custom_call.1} parent=5 // pred_check_branch
        %800 = sbr.rel (%p798) target = $region80
      $region79: #{tpu_custom_call.1} parent=5 // pred_region
        %s801 = ssub.s32 %s23, 2
        // Predicated region
        $region81: #{tpu_custom_call.1} parent=79 // pred_check
          %p802 = pneg %p246
        $region82: #{tpu_custom_call.1} parent=79 // pred_check_branch
          %804 = sbr.rel (%p802) target = $region84
        $region83: #{tpu_custom_call.1} parent=79 // pred_region
          %s805 = sand.u32 %s231, 1
          %s806 = scalar_lea.sflag [#allocation7], %s805
          %s807 = sand.u32 %s231, 1
          %s808 = smul.addr %s807, 16
          %s809 = scalar_lea.vmem [#allocation13], %s808
          %811 = dma.done %s806, 256
        $region84: #{tpu_custom_call.1} parent=79 // pred_fallthru
          _
      $region80: #{tpu_custom_call.1} parent=5 // pred_fallthru
        _
    $region6: #{tpu_custom_call.1} parent=1 // loop_footer
      %s27 = sadd.s32 1, %s23
    $region7: #{tpu_custom_call.1} parent=1 // loop_footer_branch
      %22 = sbr.rel target = $region3
    $region8: #{tpu_custom_call.1} parent=1 // loop_exit
      _
    %812 = vsyncpa [#allocation6], 1
    %s813 = scalar_lea.sflag [#allocation6], 1
    %814 = vsyncpa %s813, 1
    %815 = vsyncpa [#allocation9], 1
    %816 = vsyncpa [#allocation12], 1
    %817 = vsyncpa [#allocation7], 1
    %s818 = scalar_lea.sflag [#allocation7], 1
    %819 = vsyncpa %s818, 1

</llo_original>
